<compile_context>
chip_gen: v6e
topology: v6e:2x2x1
jax: 0.10.0
libtpu: 0.0.40
codegen_flags: <defaults>
</compile_context>

<pallas_src>
import jax
import jax.numpy as jnp
from jax.experimental import pallas as pl
from jax.experimental.pallas import tpu as pltpu

G_DIM = 8                     # combiner_dim
INTERMEDIATE_LAYER_DIM = 16   # hidden layer dim
Z_DIM = 16                    # latent_dim

# Batch tile size for large batches (multiple of 8; 512-4096 per review).
_MAX_TB = 1024


def _encoder_mlp_kernel(g_ref, w1_ref, b1_ref, w2_ref, b2_ref, out_ref):
    # Layer 1: Linear(combiner_dim -> inter_dim) + tanh  (MXU + VPU/EUP)
    h = jnp.tanh(
        jnp.dot(g_ref[...], w1_ref[...], preferred_element_type=jnp.float32)
        + b1_ref[...]
    )
    # Layer 2: Linear(inter_dim -> 2 * latent_dim); single lane-dense write.
    out_ref[...] = (
        jnp.dot(h, w2_ref[...], preferred_element_type=jnp.float32)
        + b2_ref[...]
    ).astype(out_ref.dtype)


def encoder_mlp_forward(g, w1, b1, w2, b2):
    """g: (B, G_DIM) float32. Returns (mu, logvar), each (B, Z_DIM)."""
    batch = g.shape[0]

    # Tile the batch axis. For small batches the block equals the full array
    # (satisfies the (8,128) rule via "equal full dim"); for large batches use
    # a big multiple-of-8 tile so DMA/compute overlap reaches the HBM roofline.
    if batch <= _MAX_TB:
        tb = batch
    else:
        tb = _MAX_TB
    grid = (pl.cdiv(batch, tb),)

    # Weights/biases: constant index_map -> DMA'd once, stay VMEM-resident.
    const_spec = lambda shape: pl.BlockSpec(shape, lambda i: (0, 0))

    out = pl.pallas_call(
        _encoder_mlp_kernel,
        out_shape=jax.ShapeDtypeStruct((batch, 2 * Z_DIM), jnp.float32),
        grid=grid,
        in_specs=[
            pl.BlockSpec((tb, G_DIM), lambda i: (i, 0)),   # g: row-tiled
            const_spec(w1.shape),
            const_spec(b1.shape),
            const_spec(w2.shape),
            const_spec(b2.shape),
        ],
        out_specs=pl.BlockSpec((tb, 2 * Z_DIM), lambda i: (i, 0)),
        compiler_params=pltpu.CompilerParams(
            dimension_semantics=("parallel",),
        ),
    )(g, w1, b1, w2, b2)

    # Split into (mu, logvar) in the wrapper — cheap XLA slice, keeps the
    # kernel's output lane-dense.
    return out[:, :Z_DIM], out[:, Z_DIM:]


def init_params(key):
    """Deterministic init matching nn.Linear default (U(-1/sqrt(fan_in), +))."""
    k1, k2, k3, k4 = jax.random.split(key, 4)
    bound1 = 1.0 / jnp.sqrt(jnp.float32(G_DIM))
    bound2 = 1.0 / jnp.sqrt(jnp.float32(INTERMEDIATE_LAYER_DIM))
    # stored as (in_features, out_features)
    w1 = jax.random.uniform(k1, (G_DIM, INTERMEDIATE_LAYER_DIM),
                            jnp.float32, -bound1, bound1)
    b1 = jax.random.uniform(k2, (1, INTERMEDIATE_LAYER_DIM),
                            jnp.float32, -bound1, bound1)
    w2 = jax.random.uniform(k3, (INTERMEDIATE_LAYER_DIM, 2 * Z_DIM),
                            jnp.float32, -bound2, bound2)
    b2 = jax.random.uniform(k4, (1, 2 * Z_DIM),
                            jnp.float32, -bound2, bound2)
    return w1, b1, w2, b2


def reference_forward(g, w1, b1, w2, b2):
    h = jnp.tanh(g @ w1 + b1)
    out = h @ w2 + b2
    return out[:, :Z_DIM], out[:, Z_DIM:]


if __name__ == "__main__":
    key = jax.random.PRNGKey(0)
    k_g, k_p = jax.random.split(key)

    # Small shapes consistent with the module (note: at B=2 the pallas_call
    # fixed overhead dominates; the kernel design targets large batches).
    batch = 2
    g = jax.random.normal(k_g, (batch, G_DIM), jnp.float32)
    w1, b1, w2, b2 = init_params(k_p)

    mu, logvar = encoder_mlp_forward(g, w1, b1, w2, b2)
    jax.block_until_ready((mu, logvar))

    mu_ref, logvar_ref = reference_forward(g, w1, b1, w2, b2)
    assert mu.shape == (batch, Z_DIM) and logvar.shape == (batch, Z_DIM)
    assert jnp.allclose(mu, mu_ref, atol=1e-5, rtol=1e-5)
    assert jnp.allclose(logvar, logvar_ref, atol=1e-5, rtol=1e-5)

    # Also validate the tiled (large-batch) path that exercises the grid.
    big_batch = 4 * _MAX_TB + 8
    g_big = jax.random.normal(jax.random.PRNGKey(1), (big_batch, G_DIM),
                              jnp.float32)
    mu_b, logvar_b = encoder_mlp_forward(g_big, w1, b1, w2, b2)
    jax.block_until_ready((mu_b, logvar_b))
    mu_br, logvar_br = reference_forward(g_big, w1, b1, w2, b2)
    assert jnp.allclose(mu_b, mu_br, atol=1e-5, rtol=1e-5)
    assert jnp.allclose(logvar_b, logvar_br, atol=1e-5, rtol=1e-5)

    print("KERNEL_OK")
</pallas_src>

<mosaic_0001>
module attributes {stable_mosaic.version = 11 : i64} {
  func.func @_encoder_mlp_kernel(%arg0: i32, %arg1: memref<2x8xf32, #tpu.memory_space<vmem>>, %arg2: memref<8x16xf32, #tpu.memory_space<vmem>>, %arg3: memref<1x16xf32, #tpu.memory_space<vmem>>, %arg4: memref<16x32xf32, #tpu.memory_space<vmem>>, %arg5: memref<1x32xf32, #tpu.memory_space<vmem>>, %arg6: memref<2x32xf32, #tpu.memory_space<vmem>>) attributes {dimension_semantics = [#tpu.dimension_semantics<parallel>], iteration_bounds = array<i64: 1>, scalar_prefetch = 0 : i64, scratch_operands = 0 : i64, tpu.core_type = #tpu.core_type<tc>, window_params = [{transform_indices = @transform_0, window_bounds = array<i64: 2, 8>}, {pipeline_mode = #tpu.pipeline_mode<synchronous>, transform_indices = @transform_1, window_bounds = array<i64: 8, 16>}, {pipeline_mode = #tpu.pipeline_mode<synchronous>, transform_indices = @transform_2, window_bounds = array<i64: 1, 16>}, {pipeline_mode = #tpu.pipeline_mode<synchronous>, transform_indices = @transform_3, window_bounds = array<i64: 16, 32>}, {pipeline_mode = #tpu.pipeline_mode<synchronous>, transform_indices = @transform_4, window_bounds = array<i64: 1, 32>}, {transform_indices = @transform_5, window_bounds = array<i64: 2, 32>}]} {
    %c0 = arith.constant 0 : index
    %c0_0 = arith.constant 0 : index
    %0 = vector.load %arg1[%c0, %c0_0] : memref<2x8xf32, #tpu.memory_space<vmem>>, vector<2x8xf32>
    %c0_1 = arith.constant 0 : index
    %c0_2 = arith.constant 0 : index
    %1 = vector.load %arg2[%c0_1, %c0_2] : memref<8x16xf32, #tpu.memory_space<vmem>>, vector<8x16xf32>
    %cst = arith.constant dense<0.000000e+00> : vector<2x16xf32>
    %2 = tpu.matmul %0, %1, %cst {dimension_numbers = #tpu.dot_dimension_numbers<[1], [0], [0], [1], [0, 0, 1, 1], [], []>} : vector<2x8xf32>, vector<8x16xf32>, vector<2x16xf32> -> vector<2x16xf32>
    %c0_3 = arith.constant 0 : index
    %c0_4 = arith.constant 0 : index
    %3 = vector.load %arg3[%c0_3, %c0_4] : memref<1x16xf32, #tpu.memory_space<vmem>>, vector<1x16xf32>
    %4 = vector.broadcast %3 : vector<1x16xf32> to vector<2x16xf32>
    %5 = arith.addf %2, %4 : vector<2x16xf32>
    %6 = math.tanh %5 : vector<2x16xf32>
    %c0_5 = arith.constant 0 : index
    %c0_6 = arith.constant 0 : index
    %7 = vector.load %arg4[%c0_5, %c0_6] : memref<16x32xf32, #tpu.memory_space<vmem>>, vector<16x32xf32>
    %cst_7 = arith.constant dense<0.000000e+00> : vector<2x32xf32>
    %8 = tpu.matmul %6, %7, %cst_7 {dimension_numbers = #tpu.dot_dimension_numbers<[1], [0], [0], [1], [0, 0, 1, 1], [], []>} : vector<2x16xf32>, vector<16x32xf32>, vector<2x32xf32> -> vector<2x32xf32>
    %c0_8 = arith.constant 0 : index
    %c0_9 = arith.constant 0 : index
    %9 = vector.load %arg5[%c0_8, %c0_9] : memref<1x32xf32, #tpu.memory_space<vmem>>, vector<1x32xf32>
    %10 = vector.broadcast %9 : vector<1x32xf32> to vector<2x32xf32>
    %11 = arith.addf %8, %10 : vector<2x32xf32>
    %c0_10 = arith.constant 0 : index
    %c0_11 = arith.constant 0 : index
    %12 = vector.load %arg6[%c0_10, %c0_11] : memref<2x32xf32, #tpu.memory_space<vmem>>, vector<2x32xf32>
    tpu.vector_store %arg6[%c0_10, %c0_11], %11 {strides = array<i32>} : memref<2x32xf32, #tpu.memory_space<vmem>>, vector<2x32xf32>,
    return
  }
  func.func @transform_0(%arg0: i32) -> (i32, i32) {
    %c0_i32 = arith.constant 0 : i32
    %c0_i32_0 = arith.constant 0 : i32
    return %arg0, %c0_i32 : i32, i32
  }
  func.func @transform_1(%arg0: i32) -> (i32, i32) {
    %c0_i32 = arith.constant 0 : i32
    %c0_i32_0 = arith.constant 0 : i32
    %c0_i32_1 = arith.constant 0 : i32
    return %c0_i32, %c0_i32_0 : i32, i32
  }
  func.func @transform_2(%arg0: i32) -> (i32, i32) {
    %c0_i32 = arith.constant 0 : i32
    %c0_i32_0 = arith.constant 0 : i32
    %c0_i32_1 = arith.constant 0 : i32
    return %c0_i32, %c0_i32_0 : i32, i32
  }
  func.func @transform_3(%arg0: i32) -> (i32, i32) {
    %c0_i32 = arith.constant 0 : i32
    %c0_i32_0 = arith.constant 0 : i32
    %c0_i32_1 = arith.constant 0 : i32
    return %c0_i32, %c0_i32_0 : i32, i32
  }
  func.func @transform_4(%arg0: i32) -> (i32, i32) {
    %c0_i32 = arith.constant 0 : i32
    %c0_i32_0 = arith.constant 0 : i32
    %c0_i32_1 = arith.constant 0 : i32
    return %c0_i32, %c0_i32_0 : i32, i32
  }
  func.func @transform_5(%arg0: i32) -> (i32, i32) {
    %c0_i32 = arith.constant 0 : i32
    %c0_i32_0 = arith.constant 0 : i32
    return %arg0, %c0_i32 : i32, i32
  }
}

</mosaic_0001>

<llo_original>
// kernel: tpu_custom_call.1
$region0: #{tpu_custom_call.1}
  #allocation0 [shape = 'u32[]', space=smem, size = 0x4, offset = 0x4, fixed_abs, tag = 'smem constant byte address 0x4 - core index']
  #allocation1 [shape = 'u32[144,128]{1,0:T(1,128)}', space=vmem, size = 0x12000, scoped, tag = 'internal scratch']
  %s0 = inlined_call_operand.hbm [shape: f32[2,8], index: 0, kind: input, shape index: {}]
  %s1 = inlined_call_operand.hbm [shape: f32[8,16], index: 1, kind: input, shape index: {}]
  %s2 = inlined_call_operand.vmem [shape: f32[1,16], index: 2, kind: input, shape index: {}]
  %s3 = inlined_call_operand.hbm [shape: f32[16,32], index: 3, kind: input, shape index: {}]
  %s4 = inlined_call_operand.vmem [shape: f32[1,32], index: 4, kind: input, shape index: {}]
  %s5 = inlined_call_operand.hbm [shape: f32[2,32], index: 5, kind: output, shape index: {}]
  %s6 = sld [smem:[#allocation0]]
  $region42: #{tpu_custom_call.1} parent=0
    _
  %s8 = ssub.s32 1, %s6
  %s9 = scalar_select 0, %s8, %s6
  $region1: #{tpu_custom_call.1} parent=0
    #allocation2 [shape = 'u8[1024]{0}', space=vmem, size = 0x400, scoped, tag = 'input window, operand 0, single buffered']
    #allocation3 [shape = 's32[1]{0}', space=sflag, size = 0x4, scoped, tag = 'scoped memory for tpu_custom_call.1']
    #allocation4 [shape = 's32[1]{0}', space=sflag, size = 0x4, scoped, tag = 'scoped memory for tpu_custom_call.1']
    #allocation5 [shape = 'u8[4096]{0}', space=vmem, size = 0x1000, scoped, tag = 'input window, operand 1, single buffered']
    #allocation6 [shape = 's32[1]{0}', space=sflag, size = 0x4, scoped, tag = 'scoped memory for tpu_custom_call.1']
    #allocation7 [shape = 'u8[8192]{0}', space=vmem, size = 0x2000, scoped, tag = 'input window, operand 3, single buffered']
    #allocation8 [shape = 'u8[1024]{0}', space=vmem, size = 0x400, scoped, tag = 'output window, operand 0, single buffered']
    %10 = vsyncpa [#allocation3], 0
    %11 = vsyncpa [#allocation6], 0
    %12 = vsyncpa [#allocation4], 0
    // Predicated region
    $region2: #{tpu_custom_call.1} parent=1 // pred_check
      _
    $region3: #{tpu_custom_call.1} parent=1 // pred_check_branch
      %14 = sbr.rel (0) target = $region5
    $region4: #{tpu_custom_call.1} parent=1 // pred_region
      %s16 = ssub.s32 32, 32
      %17 = vsyncadd [#allocation3], %s16
      %s19 = sshll.u32 [#allocation2], 4
      %s20 = int_to_ptr.vmem [resolvable:$true] %s19
      %22 = dma.hbm_to_vmem [thread:$0]  %s0, 32, %s20, [#allocation3]
    $region5: #{tpu_custom_call.1} parent=1 // pred_fallthru
      _
    // Predicated region
    $region6: #{tpu_custom_call.1} parent=1 // pred_check
      _
    $region7: #{tpu_custom_call.1} parent=1 // pred_check_branch
      %24 = sbr.rel (0) target = $region9
    $region8: #{tpu_custom_call.1} parent=1 // pred_region
      %s26 = ssub.s32 128, 128
      %27 = vsyncadd [#allocation6], %s26
      %s29 = sshll.u32 [#allocation5], 4
      %s30 = int_to_ptr.vmem [resolvable:$true] %s29
      %32 = dma.hbm_to_vmem [thread:$0]  %s1, 128, %s30, [#allocation6]
    $region9: #{tpu_custom_call.1} parent=1 // pred_fallthru
      _
    // Predicated region
    $region10: #{tpu_custom_call.1} parent=1 // pred_check
      _
    $region11: #{tpu_custom_call.1} parent=1 // pred_check_branch
      %34 = sbr.rel (0) target = $region13
    $region12: #{tpu_custom_call.1} parent=1 // pred_region
      _
    $region13: #{tpu_custom_call.1} parent=1 // pred_fallthru
      _
    // Predicated region
    $region14: #{tpu_custom_call.1} parent=1 // pred_check
      _
    $region15: #{tpu_custom_call.1} parent=1 // pred_check_branch
      %36 = sbr.rel (0) target = $region17
    $region16: #{tpu_custom_call.1} parent=1 // pred_region
      %s38 = ssub.s32 256, 256
      %39 = vsyncadd [#allocation6], %s38
      %s40 = sshll.u32 [#allocation7], 4
      %s41 = int_to_ptr.vmem [resolvable:$true] %s40
      %46 = dma.hbm_to_vmem [thread:$0]  %s3, 256, %s41, [#allocation6], 128, 128, 8
    $region17: #{tpu_custom_call.1} parent=1 // pred_fallthru
      _
    // Predicated region
    $region18: #{tpu_custom_call.1} parent=1 // pred_check
      _
    $region19: #{tpu_custom_call.1} parent=1 // pred_check_branch
      %48 = sbr.rel (0) target = $region21
    $region20: #{tpu_custom_call.1} parent=1 // pred_region
      _
    $region21: #{tpu_custom_call.1} parent=1 // pred_fallthru
      _
    // Predicated region
    $region22: #{tpu_custom_call.1} parent=1 // pred_check
      _
    $region23: #{tpu_custom_call.1} parent=1 // pred_check_branch
      %50 = sbr.rel (0) target = $region25
    $region24: #{tpu_custom_call.1} parent=1 // pred_region
      %51 = dma.done [#allocation3], 32
    $region25: #{tpu_custom_call.1} parent=1 // pred_fallthru
      _
    // Predicated region
    $region26: #{tpu_custom_call.1} parent=1 // pred_check
      _
    $region27: #{tpu_custom_call.1} parent=1 // pred_check_branch
      %53 = sbr.rel (0) target = $region29
    $region28: #{tpu_custom_call.1} parent=1 // pred_region
      %54 = dma.done [#allocation6], 128
    $region29: #{tpu_custom_call.1} parent=1 // pred_fallthru
      _
    // Predicated region
    $region30: #{tpu_custom_call.1} parent=1 // pred_check
      _
    $region31: #{tpu_custom_call.1} parent=1 // pred_check_branch
      %56 = sbr.rel (0) target = $region33
    $region32: #{tpu_custom_call.1} parent=1 // pred_region
      %57 = dma.done [#allocation6], 256
    $region33: #{tpu_custom_call.1} parent=1 // pred_fallthru
      _
    %v58 = vld [vmem:[#allocation2] sm:$0x3]
    %v59 = vld [vmem:[#allocation5] sm:$0xff]
    %v60 = vld [vmem:[%s2] sm:$0x1]
    %v62 = vlaneseq
    %v63 = vshrl.u32 %v62, 7
    %v64 = vsub.s32 0, %v63
    %v65 = vrot.slane %v60, %v64
    %vm67 = vcmask 64512
    %v69 = vsel %vm67, %v58, 0
    %71 = vmatprep.subr.mxu0 0.0
    %72 = vmatpush1.msra.mxu0 0.0
    %73 = vmatprep.subr.mxu0 0.0
    %74 = vmatpush1.msra.mxu0 0.0
    %75 = vmatprep.subr.mxu0 0.0
    %76 = vmatpush1.msra.mxu0 0.0
    %77 = vmatprep.subr.mxu0 0.0
    %78 = vmatpush1.msra.mxu0 0.0
    %79 = vmatprep.subr.mxu0 0.0
    %80 = vmatpush1.msra.mxu0 0.0
    %81 = vmatprep.subr.mxu0 0.0
    %82 = vmatpush1.msra.mxu0 0.0
    %83 = vmatprep.subr.mxu0 0.0
    %84 = vmatpush1.msra.mxu0 0.0
    %85 = vmatprep.subr.mxu0 0.0
    %86 = vmatpush1.msra.mxu0 0.0
    %87 = vmatprep.subr.mxu0 0.0
    %88 = vmatpush1.msra.mxu0 0.0
    %89 = vmatprep.subr.mxu0 0.0
    %90 = vmatpush1.msra.mxu0 0.0
    %91 = vmatprep.subr.mxu0 0.0
    %92 = vmatpush1.msra.mxu0 0.0
    %93 = vmatprep.subr.mxu0 0.0
    %94 = vmatpush1.msra.mxu0 0.0
    %95 = vmatprep.subr.mxu0 0.0
    %96 = vmatpush1.msra.mxu0 0.0
    %97 = vmatprep.subr.mxu0 0.0
    %98 = vmatpush1.msra.mxu0 0.0
    %99 = vmatprep.subr.mxu0 0.0
    %100 = vmatpush1.msra.mxu0 0.0
    %101 = vmatprep.subr.mxu0 0.0
    %102 = vmatpush1.msra.mxu0 %v59
    %103 = vmatprep.subr.mxu0 0.0
    %104 = vmatpush2.msra.mxu0 0.0
    %105 = vmatprep.subr.mxu0 0.0
    %106 = vmatpush2.msra.mxu0 0.0
    %107 = vmatprep.subr.mxu0 0.0
    %108 = vmatpush2.msra.mxu0 0.0
    %109 = vmatprep.subr.mxu0 0.0
    %110 = vmatpush2.msra.mxu0 0.0
    %111 = vmatprep.subr.mxu0 0.0
    %112 = vmatpush2.msra.mxu0 0.0
    %113 = vmatprep.subr.mxu0 0.0
    %114 = vmatpush2.msra.mxu0 0.0
    %115 = vmatprep.subr.mxu0 0.0
    %116 = vmatpush2.msra.mxu0 0.0
    %117 = vmatprep.subr.mxu0 0.0
    %118 = vmatpush2.msra.mxu0 0.0
    %119 = vmatprep.subr.mxu0 0.0
    %120 = vmatpush2.msra.mxu0 0.0
    %121 = vmatprep.subr.mxu0 0.0
    %122 = vmatpush2.msra.mxu0 0.0
    %123 = vmatprep.subr.mxu0 0.0
    %124 = vmatpush2.msra.mxu0 0.0
    %125 = vmatprep.subr.mxu0 0.0
    %126 = vmatpush2.msra.mxu0 0.0
    %127 = vmatprep.subr.mxu0 0.0
    %128 = vmatpush2.msra.mxu0 0.0
    %129 = vmatprep.subr.mxu0 0.0
    %130 = vmatpush2.msra.mxu0 0.0
    %131 = vmatprep.subr.mxu0 0.0
    %132 = vmatpush2.msra.mxu0 0.0
    %133 = vmatprep.subr.mxu0 0.0
    %134 = vmatpush2.msra.mxu0 0.0
    %135 = vmatprep.mubr.f32.mxu0 0.0
    %136 = vmatmul.mubr.f32.gmra.mxu0 %v69
    %v137 = vpop.f32.mrf.mxu0
    %v138 = vadd.f32 %v65, %v137
    %v139 = vpop.f32.mrf.mxu0
    %140 = vdwg.mxu0
    %v141 = vtanh.pop %v138
    %v142 = vld [vmem:[#allocation7] sm:$0xff]
    %v143 = vld [vmem:[#allocation7 + $0x8] sm:$0xff]
    %v144 = vld [vmem:[%s4] sm:$0x1]
    %v146 = vlaneseq
    %v147 = vshrl.u32 %v146, 7
    %v148 = vsub.s32 0, %v147
    %v149 = vrot.slane %v144, %v148
    %vm151 = vcmask 130048
    %v153 = vsel %vm151, %v141, 0
    %155 = vmatprep.subr.mxu0 0.0
    %156 = vmatpush1.msra.mxu0 0.0
    %157 = vmatprep.subr.mxu0 0.0
    %158 = vmatpush1.msra.mxu0 0.0
    %159 = vmatprep.subr.mxu0 0.0
    %160 = vmatpush1.msra.mxu0 0.0
    %161 = vmatprep.subr.mxu0 0.0
    %162 = vmatpush1.msra.mxu0 0.0
    %163 = vmatprep.subr.mxu0 0.0
    %164 = vmatpush1.msra.mxu0 0.0
    %165 = vmatprep.subr.mxu0 0.0
    %166 = vmatpush1.msra.mxu0 0.0
    %167 = vmatprep.subr.mxu0 0.0
    %168 = vmatpush1.msra.mxu0 0.0
    %169 = vmatprep.subr.mxu0 0.0
    %170 = vmatpush1.msra.mxu0 0.0
    %171 = vmatprep.subr.mxu0 0.0
    %172 = vmatpush1.msra.mxu0 0.0
    %173 = vmatprep.subr.mxu0 0.0
    %174 = vmatpush1.msra.mxu0 0.0
    %175 = vmatprep.subr.mxu0 0.0
    %176 = vmatpush1.msra.mxu0 0.0
    %177 = vmatprep.subr.mxu0 0.0
    %178 = vmatpush1.msra.mxu0 0.0
    %179 = vmatprep.subr.mxu0 0.0
    %180 = vmatpush1.msra.mxu0 0.0
    %181 = vmatprep.subr.mxu0 0.0
    %182 = vmatpush1.msra.mxu0 0.0
    %183 = vmatprep.subr.mxu0 0.0
    %184 = vmatpush1.msra.mxu0 %v143
    %185 = vmatprep.subr.mxu0 0.0
    %186 = vmatpush1.msra.mxu0 %v142
    %187 = vmatprep.subr.mxu0 0.0
    %188 = vmatpush2.msra.mxu0 0.0
    %189 = vmatprep.subr.mxu0 0.0
    %190 = vmatpush2.msra.mxu0 0.0
    %191 = vmatprep.subr.mxu0 0.0
    %192 = vmatpush2.msra.mxu0 0.0
    %193 = vmatprep.subr.mxu0 0.0
    %194 = vmatpush2.msra.mxu0 0.0
    %195 = vmatprep.subr.mxu0 0.0
    %196 = vmatpush2.msra.mxu0 0.0
    %197 = vmatprep.subr.mxu0 0.0
    %198 = vmatpush2.msra.mxu0 0.0
    %199 = vmatprep.subr.mxu0 0.0
    %200 = vmatpush2.msra.mxu0 0.0
    %201 = vmatprep.subr.mxu0 0.0
    %202 = vmatpush2.msra.mxu0 0.0
    %203 = vmatprep.subr.mxu0 0.0
    %204 = vmatpush2.msra.mxu0 0.0
    %205 = vmatprep.subr.mxu0 0.0
    %206 = vmatpush2.msra.mxu0 0.0
    %207 = vmatprep.subr.mxu0 0.0
    %208 = vmatpush2.msra.mxu0 0.0
    %209 = vmatprep.subr.mxu0 0.0
    %210 = vmatpush2.msra.mxu0 0.0
    %211 = vmatprep.subr.mxu0 0.0
    %212 = vmatpush2.msra.mxu0 0.0
    %213 = vmatprep.subr.mxu0 0.0
    %214 = vmatpush2.msra.mxu0 0.0
    %215 = vmatprep.subr.mxu0 0.0
    %216 = vmatpush2.msra.mxu0 0.0
    %217 = vmatprep.subr.mxu0 0.0
    %218 = vmatpush2.msra.mxu0 0.0
    %219 = vmatprep.mubr.f32.mxu0 0.0
    %220 = vmatmul.mubr.f32.gmra.mxu0 %v153
    %v221 = vpop.f32.mrf.mxu0
    %v222 = vadd.f32 %v149, %v221
    %v223 = vpop.f32.mrf.mxu0
    %224 = vdwg.mxu0
    %vm225 = vcmask 254976
    %226 = vst.msk [vmem:[#allocation8] sm:$0x3] %vm225, %v222
    // Predicated region
    $region34: #{tpu_custom_call.1} parent=1 // pred_check
      _
    $region35: #{tpu_custom_call.1} parent=1 // pred_check_branch
      %228 = sbr.rel (0) target = $region37
    $region36: #{tpu_custom_call.1} parent=1 // pred_region
      %s230 = ssub.s32 32, 32
      %231 = vsyncadd [#allocation4], %s230
      %s233 = sshll.u32 [#allocation8], 4
      %s234 = int_to_ptr.vmem [resolvable:$true] %s233
      %236 = dma.vmem_to_hbm [thread:$0]  %s234, 32, %s5, [#allocation4]
    $region37: #{tpu_custom_call.1} parent=1 // pred_fallthru
      _
    // Predicated region
    $region38: #{tpu_custom_call.1} parent=1 // pred_check
      _
    $region39: #{tpu_custom_call.1} parent=1 // pred_check_branch
      %238 = sbr.rel (0) target = $region41
    $region40: #{tpu_custom_call.1} parent=1 // pred_region
      %239 = dma.done [#allocation4], 32
    $region41: #{tpu_custom_call.1} parent=1 // pred_fallthru
      _
    %240 = vsyncpa [#allocation3], 1
    %241 = vsyncpa [#allocation6], 1
    %242 = vsyncpa [#allocation4], 1

</llo_original>
